<compile_context>
chip_gen: v6e
topology: v6e:2x2x1
jax: 0.10.0
libtpu: 0.0.40
codegen_flags: <defaults>
</compile_context>

<pallas_src>
import functools
import math

import jax
import jax.numpy as jnp
from jax.experimental import pallas as pl
from jax.experimental.pallas import tpu as pltpu

_LANE = 128


def _round_up(x, m):
    return (x + m - 1) // m * m


def _largest_divisor_at_most(n, cap):
    cap = max(1, min(n, cap))
    for d in range(cap, 0, -1):
        if n % d == 0:
            return d
    return 1


# ----------------------------------------------------------------------------
# Weight preparation (done once, outside the per-call hot path).
# ----------------------------------------------------------------------------
def prepare_token_merge_weight(weight, in_features, patch_size=(2, 2),
                               compute_dtype=jnp.bfloat16):
    """nn.Linear weight (out_features, h*w*E) -> (h, w*E, Npad) in compute dtype.

    Feature order inside K matches the rearrange: (nh, nw, e) with nh slowest,
    so rows [nh*w*E : (nh+1)*w*E] of W^T are the contiguous slab used by the
    nh-th partial matmul.  Npad is rounded up to a multiple of 128 so output
    stores are lane-dense (zero-padded columns are sliced off in the wrapper).
    """
    h, w = patch_size
    out_features, k_in = weight.shape
    assert k_in == in_features * h * w
    n_pad = _round_up(out_features, _LANE)
    w_t = weight.T.astype(compute_dtype)                       # (K, N)
    if n_pad != out_features:
        w_t = jnp.pad(w_t, ((0, 0), (0, n_pad - out_features)))
    return w_t.reshape(h, w * in_features, n_pad)


# ----------------------------------------------------------------------------
# Fused kernel: patch gather done by the BlockSpec DMAs, h partial matmuls.
# ----------------------------------------------------------------------------
def _fused_merge_kernel(*refs, num_row_patches, compute_dtype):
    x_refs = refs[:num_row_patches]          # each: (bR, Wp, w*E)
    w_ref = refs[num_row_patches]            # (h, w*E, Npad)
    o_ref = refs[num_row_patches + 1]        # (bR*Wp, Npad)

    acc = None
    for p in range(num_row_patches):
        xt = x_refs[p][...]                                   # (bR, Wp, w*E)
        bR, Wp, kwe = xt.shape
        # Collapse of leading dims; layout-preserving because Wp is a multiple
        # of the sublane tile (checked in the wrapper).  Cast to bf16 after the
        # load so HBM traffic stays in the activation dtype.
        xt = xt.reshape(bR * Wp, kwe).astype(compute_dtype)
        part = jnp.dot(xt, w_ref[p], preferred_element_type=jnp.float32)
        acc = part if acc is None else acc + part
    o_ref[...] = acc.astype(o_ref.dtype)


def _token_merge_fused(x, w_prep, out_features, patch_size, target_rows=512):
    h, w = patch_size
    B, H, W, E = x.shape
    Hp, Wp = H // h, W // w
    R = B * Hp                    # row-pair index (b, hp)
    M = R * Wp                    # number of output tokens
    wE = w * E
    K = h * wE
    n_pad = w_prep.shape[-1]
    x_item = jnp.dtype(x.dtype).itemsize
    w_item = jnp.dtype(w_prep.dtype).itemsize

    # Free, contiguous reshape: (B, H, W, E) -> (B*Hp, h, Wp, w*E).
    # The patch gather itself is done by the BlockSpec DMAs below, so the
    # rearranged activation is never materialized in HBM.
    xr = x.reshape(R, h, Wp, wE)

    # Row block: aim for ~target_rows output rows per grid step (amortizes the
    # ~0.35us/step overhead), then shrink until the double-buffered working set
    # fits a conservative VMEM budget (safe on v7x's 64 MiB physical VMEM; the
    # constant-index weight is only DMA'd once but still gets 2 buffers).
    def vmem_bytes(bR_):
        tin = 2 * bR_ * Wp * K * x_item          # h input tiles, double-buffered
        twt = 2 * K * n_pad * w_item             # resident weight
        tout = 2 * bR_ * Wp * n_pad * x_item     # output tiles, double-buffered
        tacc = bR_ * Wp * n_pad * 4              # f32 accumulator
        return tin + twt + tout + tacc

    bR = _largest_divisor_at_most(R, max(1, target_rows // Wp))
    while bR > 1 and vmem_bytes(bR) > 24 * 1024 * 1024:
        bR = _largest_divisor_at_most(R, bR - 1)

    in_specs = [
        pl.BlockSpec((bR, None, Wp, wE), lambda i, _nh=nh: (i, _nh, 0, 0))
        for nh in range(h)
    ]
    # Weight: constant index map -> copied into VMEM once and kept resident.
    in_specs.append(pl.BlockSpec((h, wE, n_pad), lambda i: (0, 0, 0)))
    out_spec = pl.BlockSpec((bR * Wp, n_pad), lambda i: (i, 0))

    kernel = functools.partial(_fused_merge_kernel, num_row_patches=h,
                               compute_dtype=w_prep.dtype)

    y2d = pl.pallas_call(
        kernel,
        out_shape=jax.ShapeDtypeStruct((M, n_pad), x.dtype),
        grid_spec=pltpu.PrefetchScalarGridSpec(
            num_scalar_prefetch=0,
            grid=(R // bR,),
            in_specs=in_specs,
            out_specs=out_spec,
        ),
        compiler_params=pltpu.CompilerParams(
            dimension_semantics=("parallel",),   # v7x: two TCs shard the M axis
            vmem_limit_bytes=64 * 1024 * 1024,
        ),
        cost_estimate=pl.CostEstimate(
            flops=2 * M * K * n_pad,
            transcendentals=0,
            bytes_accessed=M * K * x_item + K * n_pad * w_item + M * n_pad * x_item,
        ),
    )(*([xr] * h), w_prep)

    y = y2d[:, :out_features] if n_pad != out_features else y2d
    return y.reshape(B, Hp, Wp, out_features)


# ----------------------------------------------------------------------------
# Fallback: materialized rearrange + plain tiled 2D matmul (only used when the
# fused layout constraints don't hold, e.g. odd W/patch sizes).
# ----------------------------------------------------------------------------
def _matmul_kernel(x_ref, w_ref, o_ref, *, compute_dtype):
    o_ref[...] = jnp.dot(
        x_ref[...].astype(compute_dtype),
        w_ref[...],
        preferred_element_type=jnp.float32,
    ).astype(o_ref.dtype)


def _token_merge_rearranged(x, w_prep, out_features, patch_size, target_rows=512):
    h, w = patch_size
    B, H, W, E = x.shape
    Hp, Wp = H // h, W // w
    M = B * Hp * Wp
    K = h * w * E
    n_pad = w_prep.shape[-1]
    x_item = jnp.dtype(x.dtype).itemsize
    w_item = jnp.dtype(w_prep.dtype).itemsize

    xp = x.reshape(B, Hp, h, Wp, w, E)
    xp = jnp.transpose(xp, (0, 1, 3, 2, 4, 5)).reshape(M, K)
    w2d = w_prep.reshape(K, n_pad)

    tm = M if M <= target_rows else target_rows   # target_rows % 8 == 0
    kernel = functools.partial(_matmul_kernel, compute_dtype=w_prep.dtype)
    y2d = pl.pallas_call(
        kernel,
        out_shape=jax.ShapeDtypeStruct((M, n_pad), x.dtype),
        grid_spec=pltpu.PrefetchScalarGridSpec(
            num_scalar_prefetch=0,
            grid=(pl.cdiv(M, tm),),
            in_specs=[
                pl.BlockSpec((tm, K), lambda i: (i, 0)),
                pl.BlockSpec((K, n_pad), lambda i: (0, 0)),
            ],
            out_specs=pl.BlockSpec((tm, n_pad), lambda i: (i, 0)),
        ),
        compiler_params=pltpu.CompilerParams(
            dimension_semantics=("parallel",),
            vmem_limit_bytes=64 * 1024 * 1024,
        ),
        cost_estimate=pl.CostEstimate(
            flops=2 * M * K * n_pad,
            transcendentals=0,
            bytes_accessed=M * K * x_item + K * n_pad * w_item + M * n_pad * x_item,
        ),
    )(xp, w2d)
    y = y2d[:, :out_features] if n_pad != out_features else y2d
    return y.reshape(B, Hp, Wp, out_features)


# ----------------------------------------------------------------------------
# Public forward pass.
# ----------------------------------------------------------------------------
def token_merge(x, weight_prepared, out_features, patch_size=(2, 2),
                target_rows=512):
    """x: (B, H, W, E); weight_prepared: output of prepare_token_merge_weight.

    Returns (B, H//h, W//w, out_features) in x.dtype.
    """
    h, w = patch_size
    B, H, W, E = x.shape
    assert H % h == 0 and W % w == 0
    Wp = W // w
    # The fused in-kernel collapse (bR, Wp, w*E) -> (bR*Wp, w*E) is free when Wp
    # is a multiple of the sublane tile for the activation dtype.
    sublane = 8 * (4 // jnp.dtype(x.dtype).itemsize)
    if Wp % sublane == 0:
        return _token_merge_fused(x, weight_prepared, out_features, (h, w),
                                  target_rows)
    # TODO(synk): odd spatial sizes fall back to a materialized rearrange.
    return _token_merge_rearranged(x, weight_prepared, out_features, (h, w),
                                   target_rows)


def _reference(x, weight, patch_size=(2, 2)):
    h, w = patch_size
    B, H, W, E = x.shape
    xp = x.reshape(B, H // h, h, W // w, w, E)
    xp = jnp.transpose(xp, (0, 1, 3, 2, 4, 5)).reshape(B, H // h, W // w, h * w * E)
    return jnp.einsum("bhwk,ok->bhwo", xp, weight)


if __name__ == "__main__":
    key = jax.random.PRNGKey(0)
    k_x, k_w = jax.random.split(key)

    # Small shapes consistent with the module: batch=2, H=W=16, in_features=4,
    # out_features=32, patch_size=(2,2) => projection is (M=128, K=16) @ (16, 32).
    B, H, W, E = 2, 16, 16, 4
    out_features = 32
    patch_size = (2, 2)
    k_in = E * patch_size[0] * patch_size[1]

    x = jax.random.normal(k_x, (B, H, W, E), dtype=jnp.float32)

    # Deterministic nn.Linear-style init: U(-1/sqrt(fan_in), 1/sqrt(fan_in)), no bias.
    bound = 1.0 / math.sqrt(k_in)
    weight = jax.random.uniform(
        k_w, (out_features, k_in), dtype=jnp.float32, minval=-bound, maxval=bound
    )

    # One-time weight prep (transpose + bf16 cast + lane padding), hoisted out of
    # the per-call path.
    w_prep = prepare_token_merge_weight(weight, E, patch_size,
                                        compute_dtype=jnp.bfloat16)

    fwd = jax.jit(functools.partial(token_merge, out_features=out_features,
                                    patch_size=patch_size))
    y = jax.block_until_ready(fwd(x, w_prep))

    # References: exact-dtype (bf16-rounded inputs, f32 accumulate) and pure f32.
    y_ref_bf16 = _reference(
        x.astype(jnp.bfloat16).astype(jnp.float32),
        weight.astype(jnp.bfloat16).astype(jnp.float32),
        patch_size,
    )
    y_ref_f32 = _reference(x, weight, patch_size)

    assert y.shape == (B, H // 2, W // 2, out_features)
    assert y.dtype == x.dtype
    assert jnp.allclose(y, y_ref_bf16, atol=1e-3, rtol=1e-3)
    assert jnp.allclose(y, y_ref_f32, atol=5e-2, rtol=5e-2)

    print("KERNEL_OK")
</pallas_src>

<mosaic_0001>
module attributes {stable_mosaic.version = 11 : i64} {
  func.func @_fused_merge_kernel(%arg0: i32, %arg1: memref<16x1x8x8xf32, #tpu.memory_space<vmem>>, %arg2: memref<16x1x8x8xf32, #tpu.memory_space<vmem>>, %arg3: memref<2x8x128xbf16, #tpu.memory_space<vmem>>, %arg4: memref<128x128xf32, #tpu.memory_space<vmem>>) attributes {dimension_semantics = [#tpu.dimension_semantics<parallel>], iteration_bounds = array<i64: 1>, scalar_prefetch = 0 : i64, scratch_operands = 0 : i64, tpu.core_type = #tpu.core_type<tc>, window_params = [{transform_indices = @transform_0, window_bounds = array<i64: 16, 1, 8, 8>}, {transform_indices = @transform_1, window_bounds = array<i64: 16, 1, 8, 8>}, {pipeline_mode = #tpu.pipeline_mode<synchronous>, transform_indices = @transform_2, window_bounds = array<i64: 2, 8, 128>}, {transform_indices = @transform_3, window_bounds = array<i64: 128, 128>}]} {
    %c0 = arith.constant 0 : index
    %c0_0 = arith.constant 0 : index
    %c0_1 = arith.constant 0 : index
    %c0_2 = arith.constant 0 : index
    %0 = vector.load %arg1[%c0, %c0_0, %c0_1, %c0_2] : memref<16x1x8x8xf32, #tpu.memory_space<vmem>>, vector<16x1x8x8xf32>
    %1 = vector.shape_cast %0 : vector<16x1x8x8xf32> to vector<16x8x8xf32>
    %2 = vector.shape_cast %1 : vector<16x8x8xf32> to vector<128x8xf32>
    %3 = arith.truncf %2 : vector<128x8xf32> to vector<128x8xbf16>
    %c0_3 = arith.constant 0 : index
    %c0_4 = arith.constant 0 : index
    %c0_5 = arith.constant 0 : index
    %4 = vector.load %arg3[%c0_3, %c0_4, %c0_5] : memref<2x8x128xbf16, #tpu.memory_space<vmem>>, vector<1x8x128xbf16>
    %5 = vector.shape_cast %4 : vector<1x8x128xbf16> to vector<8x128xbf16>
    %cst = arith.constant dense<0.000000e+00> : vector<128x128xf32>
    %6 = tpu.matmul %3, %5, %cst {dimension_numbers = #tpu.dot_dimension_numbers<[1], [0], [0], [1], [0, 0, 1, 1], [], []>} : vector<128x8xbf16>, vector<8x128xbf16>, vector<128x128xf32> -> vector<128x128xf32>
    %c0_6 = arith.constant 0 : index
    %c0_7 = arith.constant 0 : index
    %c0_8 = arith.constant 0 : index
    %c0_9 = arith.constant 0 : index
    %7 = vector.load %arg2[%c0_6, %c0_7, %c0_8, %c0_9] : memref<16x1x8x8xf32, #tpu.memory_space<vmem>>, vector<16x1x8x8xf32>
    %8 = vector.shape_cast %7 : vector<16x1x8x8xf32> to vector<16x8x8xf32>
    %9 = vector.shape_cast %8 : vector<16x8x8xf32> to vector<128x8xf32>
    %10 = arith.truncf %9 : vector<128x8xf32> to vector<128x8xbf16>
    %c1 = arith.constant 1 : index
    %c0_10 = arith.constant 0 : index
    %c0_11 = arith.constant 0 : index
    %11 = vector.load %arg3[%c1, %c0_10, %c0_11] : memref<2x8x128xbf16, #tpu.memory_space<vmem>>, vector<1x8x128xbf16>
    %12 = vector.shape_cast %11 : vector<1x8x128xbf16> to vector<8x128xbf16>
    %cst_12 = arith.constant dense<0.000000e+00> : vector<128x128xf32>
    %13 = tpu.matmul %10, %12, %cst_12 {dimension_numbers = #tpu.dot_dimension_numbers<[1], [0], [0], [1], [0, 0, 1, 1], [], []>} : vector<128x8xbf16>, vector<8x128xbf16>, vector<128x128xf32> -> vector<128x128xf32>
    %14 = arith.addf %6, %13 : vector<128x128xf32>
    %c0_13 = arith.constant 0 : index
    %c0_14 = arith.constant 0 : index
    %15 = vector.load %arg4[%c0_13, %c0_14] : memref<128x128xf32, #tpu.memory_space<vmem>>, vector<128x128xf32>
    tpu.vector_store %arg4[%c0_13, %c0_14], %14 {strides = array<i32>} : memref<128x128xf32, #tpu.memory_space<vmem>>, vector<128x128xf32>,
    return
  }
  func.func @transform_0(%arg0: i32) -> (i32, i32, i32, i32) {
    %c0_i32 = arith.constant 0 : i32
    %c0_i32_0 = arith.constant 0 : i32
    %c0_i32_1 = arith.constant 0 : i32
    %c0_i32_2 = arith.constant 0 : i32
    return %arg0, %c0_i32, %c0_i32_0, %c0_i32_1 : i32, i32, i32, i32
  }
  func.func @transform_1(%arg0: i32) -> (i32, i32, i32, i32) {
    %c1_i32 = arith.constant 1 : i32
    %c0_i32 = arith.constant 0 : i32
    %c0_i32_0 = arith.constant 0 : i32
    %c0_i32_1 = arith.constant 0 : i32
    return %arg0, %c1_i32, %c0_i32, %c0_i32_0 : i32, i32, i32, i32
  }
  func.func @transform_2(%arg0: i32) -> (i32, i32, i32) {
    %c0_i32 = arith.constant 0 : i32
    %c0_i32_0 = arith.constant 0 : i32
    %c0_i32_1 = arith.constant 0 : i32
    %c0_i32_2 = arith.constant 0 : i32
    return %c0_i32, %c0_i32_0, %c0_i32_1 : i32, i32, i32
  }
  func.func @transform_3(%arg0: i32) -> (i32, i32) {
    %c0_i32 = arith.constant 0 : i32
    %c0_i32_0 = arith.constant 0 : i32
    return %arg0, %c0_i32 : i32, i32
  }
}

</mosaic_0001>

<llo_original>
// kernel: token_merge.1
$region0: #{token_merge.1}
  #allocation0 [shape = 'u32[]', space=smem, size = 0x4, offset = 0x4, fixed_abs, tag = 'smem constant byte address 0x4 - core index']
  #allocation1 [shape = 'u32[144,128]{1,0:T(1,128)}', space=vmem, size = 0x12000, scoped, tag = 'internal scratch']
  %s0 = inlined_call_operand.vmem [shape: f32[16,2,8,8], index: 0, kind: input, shape index: {}, may-alias: {0,1}]
  %s1 = inlined_call_operand.vmem [shape: f32[16,2,8,8], index: 1, kind: input, shape index: {}, may-alias: {0,1}]
  %s2 = inlined_call_operand.vmem [shape: bf16[2,8,128], index: 2, kind: input, shape index: {}]
  %s3 = inlined_call_operand.hbm [shape: f32[128,128], index: 3, kind: output, shape index: {}]
  %s4 = sld [smem:[#allocation0]]
  $region98: #{token_merge.1} parent=0
    _
  %s6 = ssub.s32 1, %s4
  %s7 = scalar_select 0, %s6, %s4
  $region1: #{token_merge.1} parent=0
    #allocation2 [shape = 'u8[65536]{0}', space=vmem, size = 0x10000, scoped, tag = 'input window, operand 0, single buffered']
    #allocation3 [shape = 'u8[65536]{0}', space=vmem, size = 0x10000, scoped, tag = 'input window, operand 1, single buffered']
    #allocation4 [shape = 'u8[65536]{0}', space=vmem, size = 0x10000, scoped, tag = 'output window, operand 0, single buffered']
    #allocation5 [shape = 's32[1]{0}', space=sflag, size = 0x4, scoped, tag = 'scoped memory for token_merge.1']
    %8 = vsyncpa [#allocation5], 0
    // Predicated region
    $region2: #{token_merge.1} parent=1 // pred_check
      _
    $region3: #{token_merge.1} parent=1 // pred_check_branch
      %10 = sbr.rel (0) target = $region5
    $region4: #{token_merge.1} parent=1 // pred_region
      // Predicated region
      $region6: #{token_merge.1} parent=4 // pred_check
        _
      $region7: #{token_merge.1} parent=4 // pred_check_branch
        %12 = sbr.rel (0) target = $region9
      $region8: #{token_merge.1} parent=4 // pred_region
        // Predicated region
        $region10: #{token_merge.1} parent=8 // pred_check
          _
        $region11: #{token_merge.1} parent=8 // pred_check_branch
          %14 = sbr.rel (0) target = $region13
        $region12: #{token_merge.1} parent=8 // pred_region
          // Predicated region
          $region25: #{token_merge.1} parent=12 // pred_check
            _
          $region26: #{token_merge.1} parent=12 // pred_check_branch
            %60 = sbr.rel (0) target = $region28
          $region27: #{token_merge.1} parent=12 // pred_region
            loop: start=0, step=1, limit=1
            $region29: #{token_merge.1} parent=27 // loop_pre_header
              _
            $region30: #{token_merge.1} parent=27 // loop_header
              %s62 = sphi 0, %s66
              %p63 = scmp.ge.s32.totalorder %s62, 1
              %s67 = sphi %s0, %s0
              %s68 = sphi [#allocation2], [#allocation2]
            $region31: #{token_merge.1} parent=27 // loop_header_branch
              %65 = sbr.rel (%p63) target = $region35
            $region32: #{token_merge.1} parent=27 // loop_body
              %v69 = vld [vmem:[%s67] sm:$0xff]
              %70 = vst [vmem:[%s68] sm:$0xff] %v69
              %v71 = vld [vmem:[%s67 + $0x10] sm:$0xff]
              %72 = vst [vmem:[%s68 + $0x8] sm:$0xff] %v71
              %v73 = vld [vmem:[%s67 + $0x20] sm:$0xff]
              %74 = vst [vmem:[%s68 + $0x10] sm:$0xff] %v73
              %v75 = vld [vmem:[%s67 + $0x30] sm:$0xff]
              %76 = vst [vmem:[%s68 + $0x18] sm:$0xff] %v75
              %v77 = vld [vmem:[%s67 + $0x40] sm:$0xff]
              %78 = vst [vmem:[%s68 + $0x20] sm:$0xff] %v77
              %v79 = vld [vmem:[%s67 + $0x50] sm:$0xff]
              %80 = vst [vmem:[%s68 + $0x28] sm:$0xff] %v79
              %v81 = vld [vmem:[%s67 + $0x60] sm:$0xff]
              %82 = vst [vmem:[%s68 + $0x30] sm:$0xff] %v81
              %v83 = vld [vmem:[%s67 + $0x70] sm:$0xff]
              %84 = vst [vmem:[%s68 + $0x38] sm:$0xff] %v83
              %v85 = vld [vmem:[%s67 + $0x80] sm:$0xff]
              %86 = vst [vmem:[%s68 + $0x40] sm:$0xff] %v85
              %v87 = vld [vmem:[%s67 + $0x90] sm:$0xff]
              %88 = vst [vmem:[%s68 + $0x48] sm:$0xff] %v87
              %v89 = vld [vmem:[%s67 + $0xa0] sm:$0xff]
              %90 = vst [vmem:[%s68 + $0x50] sm:$0xff] %v89
              %v91 = vld [vmem:[%s67 + $0xb0] sm:$0xff]
              %92 = vst [vmem:[%s68 + $0x58] sm:$0xff] %v91
              %v93 = vld [vmem:[%s67 + $0xc0] sm:$0xff]
              %94 = vst [vmem:[%s68 + $0x60] sm:$0xff] %v93
              %v95 = vld [vmem:[%s67 + $0xd0] sm:$0xff]
              %96 = vst [vmem:[%s68 + $0x68] sm:$0xff] %v95
              %v97 = vld [vmem:[%s67 + $0xe0] sm:$0xff]
              %98 = vst [vmem:[%s68 + $0x70] sm:$0xff] %v97
              %v99 = vld [vmem:[%s67 + $0xf0] sm:$0xff]
              %100 = vst [vmem:[%s68 + $0x78] sm:$0xff] %v99
            $region33: #{token_merge.1} parent=27 // loop_footer
              %s66 = sadd.s32 1, %s62
            $region34: #{token_merge.1} parent=27 // loop_footer_branch
              %61 = sbr.rel target = $region30
            $region35: #{token_merge.1} parent=27 // loop_exit
              _
          $region28: #{token_merge.1} parent=12 // pred_fallthru
            _
          // Predicated region
          $region36: #{token_merge.1} parent=12 // pred_check
            _
          $region37: #{token_merge.1} parent=12 // pred_check_branch
            %102 = sbr.rel target = $region39
          $region38: #{token_merge.1} parent=12 // pred_region
            _
          $region39: #{token_merge.1} parent=12 // pred_fallthru
            _
        $region13: #{token_merge.1} parent=8 // pred_fallthru
          _
        // Predicated region
        $region14: #{token_merge.1} parent=8 // pred_check
          _
        $region15: #{token_merge.1} parent=8 // pred_check_branch
          %16 = sbr.rel target = $region17
        $region16: #{token_merge.1} parent=8 // pred_region
          %s18 = ssub.s32 256, 1
          loop: start=0, step=1, limit=1
          $region18: #{token_merge.1} parent=16 // loop_pre_header
            _
          $region19: #{token_merge.1} parent=16 // loop_header
            %s20 = sphi 0, %s24
            %p21 = scmp.ge.s32.totalorder %s20, 1
            %s25 = sphi %s0, %s0
            %s26 = sphi [#allocation2], [#allocation2]
          $region20: #{token_merge.1} parent=16 // loop_header_branch
            %23 = sbr.rel (%p21) target = $region24
          $region21: #{token_merge.1} parent=16 // loop_body
            %v27 = vld [vmem:[%s25] sm:%s18]
            %28 = vst [vmem:[%s26] sm:%s18] %v27
            %v29 = vld [vmem:[%s25 + $0x10] sm:%s18]
            %30 = vst [vmem:[%s26 + $0x8] sm:%s18] %v29
            %v31 = vld [vmem:[%s25 + $0x20] sm:%s18]
            %32 = vst [vmem:[%s26 + $0x10] sm:%s18] %v31
            %v33 = vld [vmem:[%s25 + $0x30] sm:%s18]
            %34 = vst [vmem:[%s26 + $0x18] sm:%s18] %v33
            %v35 = vld [vmem:[%s25 + $0x40] sm:%s18]
            %36 = vst [vmem:[%s26 + $0x20] sm:%s18] %v35
            %v37 = vld [vmem:[%s25 + $0x50] sm:%s18]
            %38 = vst [vmem:[%s26 + $0x28] sm:%s18] %v37
            %v39 = vld [vmem:[%s25 + $0x60] sm:%s18]
            %40 = vst [vmem:[%s26 + $0x30] sm:%s18] %v39
            %v41 = vld [vmem:[%s25 + $0x70] sm:%s18]
            %42 = vst [vmem:[%s26 + $0x38] sm:%s18] %v41
            %v43 = vld [vmem:[%s25 + $0x80] sm:%s18]
            %44 = vst [vmem:[%s26 + $0x40] sm:%s18] %v43
            %v45 = vld [vmem:[%s25 + $0x90] sm:%s18]
            %46 = vst [vmem:[%s26 + $0x48] sm:%s18] %v45
            %v47 = vld [vmem:[%s25 + $0xa0] sm:%s18]
            %48 = vst [vmem:[%s26 + $0x50] sm:%s18] %v47
            %v49 = vld [vmem:[%s25 + $0xb0] sm:%s18]
            %50 = vst [vmem:[%s26 + $0x58] sm:%s18] %v49
            %v51 = vld [vmem:[%s25 + $0xc0] sm:%s18]
            %52 = vst [vmem:[%s26 + $0x60] sm:%s18] %v51
            %v53 = vld [vmem:[%s25 + $0xd0] sm:%s18]
            %54 = vst [vmem:[%s26 + $0x68] sm:%s18] %v53
            %v55 = vld [vmem:[%s25 + $0xe0] sm:%s18]
            %56 = vst [vmem:[%s26 + $0x70] sm:%s18] %v55
            %v57 = vld [vmem:[%s25 + $0xf0] sm:%s18]
            %58 = vst [vmem:[%s26 + $0x78] sm:%s18] %v57
          $region22: #{token_merge.1} parent=16 // loop_footer
            %s24 = sadd.s32 1, %s20
          $region23: #{token_merge.1} parent=16 // loop_footer_branch
            %19 = sbr.rel target = $region19
          $region24: #{token_merge.1} parent=16 // loop_exit
            _
        $region17: #{token_merge.1} parent=8 // pred_fallthru
          _
      $region9: #{token_merge.1} parent=4 // pred_fallthru
        _
      %103 = vnop
    $region5: #{token_merge.1} parent=1 // pred_fallthru
      _
    // Predicated region
    $region40: #{token_merge.1} parent=1 // pred_check
      _
    $region41: #{token_merge.1} parent=1 // pred_check_branch
      %105 = sbr.rel (0) target = $region43
    $region42: #{token_merge.1} parent=1 // pred_region
      %s106 = scalar_lea.vmem %s1, 8
      // Predicated region
      $region44: #{token_merge.1} parent=42 // pred_check
        _
      $region45: #{token_merge.1} parent=42 // pred_check_branch
        %108 = sbr.rel (0) target = $region47
      $region46: #{token_merge.1} parent=42 // pred_region
        // Predicated region
        $region48: #{token_merge.1} parent=46 // pred_check
          _
        $region49: #{token_merge.1} parent=46 // pred_check_branch
          %110 = sbr.rel (0) target = $region51
        $region50: #{token_merge.1} parent=46 // pred_region
          // Predicated region
          $region63: #{token_merge.1} parent=50 // pred_check
            _
          $region64: #{token_merge.1} parent=50 // pred_check_branch
            %156 = sbr.rel (0) target = $region66
          $region65: #{token_merge.1} parent=50 // pred_region
            loop: start=0, step=1, limit=1
            $region67: #{token_merge.1} parent=65 // loop_pre_header
              _
            $region68: #{token_merge.1} parent=65 // loop_header
              %s158 = sphi 0, %s162
              %p159 = scmp.ge.s32.totalorder %s158, 1
              %s163 = sphi %s106, %s106
              %s164 = sphi [#allocation3], [#allocation3]
            $region69: #{token_merge.1} parent=65 // loop_header_branch
              %161 = sbr.rel (%p159) target = $region73
            $region70: #{token_merge.1} parent=65 // loop_body
              %v165 = vld [vmem:[%s163] sm:$0xff]
              %166 = vst [vmem:[%s164] sm:$0xff] %v165
              %v167 = vld [vmem:[%s163 + $0x10] sm:$0xff]
              %168 = vst [vmem:[%s164 + $0x8] sm:$0xff] %v167
              %v169 = vld [vmem:[%s163 + $0x20] sm:$0xff]
              %170 = vst [vmem:[%s164 + $0x10] sm:$0xff] %v169
              %v171 = vld [vmem:[%s163 + $0x30] sm:$0xff]
              %172 = vst [vmem:[%s164 + $0x18] sm:$0xff] %v171
              %v173 = vld [vmem:[%s163 + $0x40] sm:$0xff]
              %174 = vst [vmem:[%s164 + $0x20] sm:$0xff] %v173
              %v175 = vld [vmem:[%s163 + $0x50] sm:$0xff]
              %176 = vst [vmem:[%s164 + $0x28] sm:$0xff] %v175
              %v177 = vld [vmem:[%s163 + $0x60] sm:$0xff]
              %178 = vst [vmem:[%s164 + $0x30] sm:$0xff] %v177
              %v179 = vld [vmem:[%s163 + $0x70] sm:$0xff]
              %180 = vst [vmem:[%s164 + $0x38] sm:$0xff] %v179
              %v181 = vld [vmem:[%s163 + $0x80] sm:$0xff]
              %182 = vst [vmem:[%s164 + $0x40] sm:$0xff] %v181
              %v183 = vld [vmem:[%s163 + $0x90] sm:$0xff]
              %184 = vst [vmem:[%s164 + $0x48] sm:$0xff] %v183
              %v185 = vld [vmem:[%s163 + $0xa0] sm:$0xff]
              %186 = vst [vmem:[%s164 + $0x50] sm:$0xff] %v185
              %v187 = vld [vmem:[%s163 + $0xb0] sm:$0xff]
              %188 = vst [vmem:[%s164 + $0x58] sm:$0xff] %v187
              %v189 = vld [vmem:[%s163 + $0xc0] sm:$0xff]
              %190 = vst [vmem:[%s164 + $0x60] sm:$0xff] %v189
              %v191 = vld [vmem:[%s163 + $0xd0] sm:$0xff]
              %192 = vst [vmem:[%s164 + $0x68] sm:$0xff] %v191
              %v193 = vld [vmem:[%s163 + $0xe0] sm:$0xff]
              %194 = vst [vmem:[%s164 + $0x70] sm:$0xff] %v193
              %v195 = vld [vmem:[%s163 + $0xf0] sm:$0xff]
              %196 = vst [vmem:[%s164 + $0x78] sm:$0xff] %v195
            $region71: #{token_merge.1} parent=65 // loop_footer
              %s162 = sadd.s32 1, %s158
            $region72: #{token_merge.1} parent=65 // loop_footer_branch
              %157 = sbr.rel target = $region68
            $region73: #{token_merge.1} parent=65 // loop_exit
              _
          $region66: #{token_merge.1} parent=50 // pred_fallthru
            _
          // Predicated region
          $region74: #{token_merge.1} parent=50 // pred_check
            _
          $region75: #{token_merge.1} parent=50 // pred_check_branch
            %198 = sbr.rel target = $region77
          $region76: #{token_merge.1} parent=50 // pred_region
            _
          $region77: #{token_merge.1} parent=50 // pred_fallthru
            _
        $region51: #{token_merge.1} parent=46 // pred_fallthru
          _
        // Predicated region
        $region52: #{token_merge.1} parent=46 // pred_check
          _
        $region53: #{token_merge.1} parent=46 // pred_check_branch
          %112 = sbr.rel target = $region55
        $region54: #{token_merge.1} parent=46 // pred_region
          %s114 = ssub.s32 256, 1
          loop: start=0, step=1, limit=1
          $region56: #{token_merge.1} parent=54 // loop_pre_header
            _
          $region57: #{token_merge.1} parent=54 // loop_header
            %s116 = sphi 0, %s120
            %p117 = scmp.ge.s32.totalorder %s116, 1
            %s121 = sphi %s106, %s106
            %s122 = sphi [#allocation3], [#allocation3]
          $region58: #{token_merge.1} parent=54 // loop_header_branch
            %119 = sbr.rel (%p117) target = $region62
          $region59: #{token_merge.1} parent=54 // loop_body
            %v123 = vld [vmem:[%s121] sm:%s114]
            %124 = vst [vmem:[%s122] sm:%s114] %v123
            %v125 = vld [vmem:[%s121 + $0x10] sm:%s114]
            %126 = vst [vmem:[%s122 + $0x8] sm:%s114] %v125
            %v127 = vld [vmem:[%s121 + $0x20] sm:%s114]
            %128 = vst [vmem:[%s122 + $0x10] sm:%s114] %v127
            %v129 = vld [vmem:[%s121 + $0x30] sm:%s114]
            %130 = vst [vmem:[%s122 + $0x18] sm:%s114] %v129
            %v131 = vld [vmem:[%s121 + $0x40] sm:%s114]
            %132 = vst [vmem:[%s122 + $0x20] sm:%s114] %v131
            %v133 = vld [vmem:[%s121 + $0x50] sm:%s114]
            %134 = vst [vmem:[%s122 + $0x28] sm:%s114] %v133
            %v135 = vld [vmem:[%s121 + $0x60] sm:%s114]
            %136 = vst [vmem:[%s122 + $0x30] sm:%s114] %v135
            %v137 = vld [vmem:[%s121 + $0x70] sm:%s114]
            %138 = vst [vmem:[%s122 + $0x38] sm:%s114] %v137
            %v139 = vld [vmem:[%s121 + $0x80] sm:%s114]
            %140 = vst [vmem:[%s122 + $0x40] sm:%s114] %v139
            %v141 = vld [vmem:[%s121 + $0x90] sm:%s114]
            %142 = vst [vmem:[%s122 + $0x48] sm:%s114] %v141
            %v143 = vld [vmem:[%s121 + $0xa0] sm:%s114]
            %144 = vst [vmem:[%s122 + $0x50] sm:%s114] %v143
            %v145 = vld [vmem:[%s121 + $0xb0] sm:%s114]
            %146 = vst [vmem:[%s122 + $0x58] sm:%s114] %v145
            %v147 = vld [vmem:[%s121 + $0xc0] sm:%s114]
            %148 = vst [vmem:[%s122 + $0x60] sm:%s114] %v147
            %v149 = vld [vmem:[%s121 + $0xd0] sm:%s114]
            %150 = vst [vmem:[%s122 + $0x68] sm:%s114] %v149
            %v151 = vld [vmem:[%s121 + $0xe0] sm:%s114]
            %152 = vst [vmem:[%s122 + $0x70] sm:%s114] %v151
            %v153 = vld [vmem:[%s121 + $0xf0] sm:%s114]
            %154 = vst [vmem:[%s122 + $0x78] sm:%s114] %v153
          $region60: #{token_merge.1} parent=54 // loop_footer
            %s120 = sadd.s32 1, %s116
          $region61: #{token_merge.1} parent=54 // loop_footer_branch
            %115 = sbr.rel target = $region57
          $region62: #{token_merge.1} parent=54 // loop_exit
            _
        $region55: #{token_merge.1} parent=46 // pred_fallthru
          _
      $region47: #{token_merge.1} parent=42 // pred_fallthru
        _
      %199 = vnop
    $region43: #{token_merge.1} parent=1 // pred_fallthru
      _
    // Predicated region
    $region78: #{token_merge.1} parent=1 // pred_check
      _
    $region79: #{token_merge.1} parent=1 // pred_check_branch
      %201 = sbr.rel (0) target = $region81
    $region80: #{token_merge.1} parent=1 // pred_region
      _
    $region81: #{token_merge.1} parent=1 // pred_fallthru
      _
    // Predicated region
    $region82: #{token_merge.1} parent=1 // pred_check
      _
    $region83: #{token_merge.1} parent=1 // pred_check_branch
      %203 = sbr.rel (0) target = $region85
    $region84: #{token_merge.1} parent=1 // pred_region
      _
    $region85: #{token_merge.1} parent=1 // pred_fallthru
      _
    // Predicated region
    $region86: #{token_merge.1} parent=1 // pred_check
      _
    $region87: #{token_merge.1} parent=1 // pred_check_branch
      %205 = sbr.rel (0) target = $region89
    $region88: #{token_merge.1} parent=1 // pred_region
      _
    $region89: #{token_merge.1} parent=1 // pred_fallthru
      _
    %v207 = vld [vmem:[#allocation2] sm:$0xff]
    %v208 = vld [vmem:[#allocation2 + $0x8] sm:$0xff]
    %v209 = vld [vmem:[#allocation2 + $0x10] sm:$0xff]
    %v210 = vld [vmem:[#allocation2 + $0x18] sm:$0xff]
    %v211 = vld [vmem:[#allocation2 + $0x20] sm:$0xff]
    %v212 = vld [vmem:[#allocation2 + $0x28] sm:$0xff]
    %v213 = vld [vmem:[#allocation2 + $0x30] sm:$0xff]
    %v214 = vld [vmem:[#allocation2 + $0x38] sm:$0xff]
    %v215 = vld [vmem:[#allocation2 + $0x40] sm:$0xff]
    %v216 = vld [vmem:[#allocation2 + $0x48] sm:$0xff]
    %v217 = vld [vmem:[#allocation2 + $0x50] sm:$0xff]
    %v218 = vld [vmem:[#allocation2 + $0x58] sm:$0xff]
    %v219 = vld [vmem:[#allocation2 + $0x60] sm:$0xff]
    %v220 = vld [vmem:[#allocation2 + $0x68] sm:$0xff]
    %v221 = vld [vmem:[#allocation2 + $0x70] sm:$0xff]
    %v222 = vld [vmem:[#allocation2 + $0x78] sm:$0xff]
    %v223 = vpack.c.bf16 %v208, %v207
    %v224 = vpack.c.bf16 %v210, %v209
    %v225 = vpack.c.bf16 %v212, %v211
    %v226 = vpack.c.bf16 %v214, %v213
    %v227 = vpack.c.bf16 %v216, %v215
    %v228 = vpack.c.bf16 %v218, %v217
    %v229 = vpack.c.bf16 %v220, %v219
    %v230 = vpack.c.bf16 %v222, %v221
    %v231 = vld [vmem:[%s2] sm:$0xf]
    %v232 = vld [vmem:[#allocation3] sm:$0xff]
    %v233 = vld [vmem:[#allocation3 + $0x8] sm:$0xff]
    %v234 = vld [vmem:[#allocation3 + $0x10] sm:$0xff]
    %v235 = vld [vmem:[#allocation3 + $0x18] sm:$0xff]
    %v236 = vld [vmem:[#allocation3 + $0x20] sm:$0xff]
    %v237 = vld [vmem:[#allocation3 + $0x28] sm:$0xff]
    %v238 = vld [vmem:[#allocation3 + $0x30] sm:$0xff]
    %v239 = vld [vmem:[#allocation3 + $0x38] sm:$0xff]
    %v240 = vld [vmem:[#allocation3 + $0x40] sm:$0xff]
    %v241 = vld [vmem:[#allocation3 + $0x48] sm:$0xff]
    %v242 = vld [vmem:[#allocation3 + $0x50] sm:$0xff]
    %v243 = vld [vmem:[#allocation3 + $0x58] sm:$0xff]
    %v244 = vld [vmem:[#allocation3 + $0x60] sm:$0xff]
    %v245 = vld [vmem:[#allocation3 + $0x68] sm:$0xff]
    %v246 = vld [vmem:[#allocation3 + $0x70] sm:$0xff]
    %v247 = vld [vmem:[#allocation3 + $0x78] sm:$0xff]
    %v248 = vpack.c.bf16 %v233, %v232
    %v249 = vpack.c.bf16 %v235, %v234
    %v250 = vpack.c.bf16 %v237, %v236
    %v251 = vpack.c.bf16 %v239, %v238
    %v252 = vpack.c.bf16 %v241, %v240
    %v253 = vpack.c.bf16 %v243, %v242
    %v254 = vpack.c.bf16 %v245, %v244
    %v255 = vpack.c.bf16 %v247, %v246
    %s256 = scalar_lea.vmem %s2, 4
    %v257 = vld [vmem:[%s256] sm:$0xf]
    %vm258 = vcmask 64512
    %v260 = vsel %vm258, %v248, 0
    %v263 = vsel %vm258, %v249, 0
    %v266 = vsel %vm258, %v250, 0
    %v269 = vsel %vm258, %v251, 0
    %v272 = vsel %vm258, %v252, 0
    %v275 = vsel %vm258, %v253, 0
    %v278 = vsel %vm258, %v254, 0
    %v281 = vsel %vm258, %v255, 0
    %vm283 = vcmask 1043456
    %v285 = vsel %vm283, %v257, 0
    %287 = vmatprep.subr.bf16.mxu0 0
    %288 = vmatpush1.bf16.msra.mxu0 0
    %289 = vmatprep.subr.bf16.mxu0 0
    %290 = vmatpush1.bf16.msra.mxu0 0
    %291 = vmatprep.subr.bf16.mxu0 0
    %292 = vmatpush1.bf16.msra.mxu0 0
    %293 = vmatprep.subr.bf16.mxu0 0
    %294 = vmatpush1.bf16.msra.mxu0 0
    %295 = vmatprep.subr.bf16.mxu0 0
    %296 = vmatpush1.bf16.msra.mxu0 0
    %297 = vmatprep.subr.bf16.mxu0 0
    %298 = vmatpush1.bf16.msra.mxu0 0
    %299 = vmatprep.subr.bf16.mxu0 0
    %300 = vmatpush1.bf16.msra.mxu0 0
    %301 = vmatprep.subr.bf16.mxu0 0
    %302 = vmatpush1.bf16.msra.mxu0 %v285
    %303 = vmatprep.subr.bf16.mxu0 0
    %304 = vmatpush2.bf16.msra.mxu0 0
    %305 = vmatprep.subr.bf16.mxu0 0
    %306 = vmatpush2.bf16.msra.mxu0 0
    %307 = vmatprep.subr.bf16.mxu0 0
    %308 = vmatpush2.bf16.msra.mxu0 0
    %309 = vmatprep.subr.bf16.mxu0 0
    %310 = vmatpush2.bf16.msra.mxu0 0
    %311 = vmatprep.subr.bf16.mxu0 0
    %312 = vmatpush2.bf16.msra.mxu0 0
    %313 = vmatprep.subr.bf16.mxu0 0
    %314 = vmatpush2.bf16.msra.mxu0 0
    %315 = vmatprep.subr.bf16.mxu0 0
    %316 = vmatpush2.bf16.msra.mxu0 0
    %317 = vmatprep.subr.bf16.mxu0 0
    %318 = vmatpush2.bf16.msra.mxu0 0
    %319 = vmatprep.mubr.bf16.mxu0 0
    %320 = vmatmul.mubr.bf16.gmra.mxu0 %v260
    %v321 = vpop.f32.mrf.mxu0
    %v322 = vadd.f32 0.0, %v321
    %v323 = vpop.f32.mrf.mxu0
    %v324 = vpop.f32.mrf.mxu0
    %v325 = vadd.f32 0.0, %v324
    %v326 = vpop.f32.mrf.mxu0
    %327 = vmatprep.mubr.bf16.mxu0 0
    %328 = vmatmul.mubr.bf16.gmra.mxu0 %v263
    %v329 = vpop.f32.mrf.mxu0
    %v330 = vadd.f32 0.0, %v329
    %v331 = vpop.f32.mrf.mxu0
    %v332 = vpop.f32.mrf.mxu0
    %v333 = vadd.f32 0.0, %v332
    %v334 = vpop.f32.mrf.mxu0
    %335 = vmatprep.mubr.bf16.mxu0 0
    %336 = vmatmul.mubr.bf16.gmra.mxu0 %v266
    %v337 = vpop.f32.mrf.mxu0
    %v338 = vadd.f32 0.0, %v337
    %v339 = vpop.f32.mrf.mxu0
    %v340 = vpop.f32.mrf.mxu0
    %v341 = vadd.f32 0.0, %v340
    %v342 = vpop.f32.mrf.mxu0
    %343 = vmatprep.mubr.bf16.mxu0 0
    %344 = vmatmul.mubr.bf16.gmra.mxu0 %v269
    %v345 = vpop.f32.mrf.mxu0
    %v346 = vadd.f32 0.0, %v345
    %v347 = vpop.f32.mrf.mxu0
    %v348 = vpop.f32.mrf.mxu0
    %v349 = vadd.f32 0.0, %v348
    %v350 = vpop.f32.mrf.mxu0
    %351 = vmatprep.mubr.bf16.mxu0 0
    %352 = vmatmul.mubr.bf16.gmra.mxu0 %v272
    %v353 = vpop.f32.mrf.mxu0
    %v354 = vadd.f32 0.0, %v353
    %v355 = vpop.f32.mrf.mxu0
    %v356 = vpop.f32.mrf.mxu0
    %v357 = vadd.f32 0.0, %v356
    %v358 = vpop.f32.mrf.mxu0
    %359 = vmatprep.mubr.bf16.mxu0 0
    %360 = vmatmul.mubr.bf16.gmra.mxu0 %v275
    %v361 = vpop.f32.mrf.mxu0
    %v362 = vadd.f32 0.0, %v361
    %v363 = vpop.f32.mrf.mxu0
    %v364 = vpop.f32.mrf.mxu0
    %v365 = vadd.f32 0.0, %v364
    %v366 = vpop.f32.mrf.mxu0
    %367 = vmatprep.mubr.bf16.mxu0 0
    %368 = vmatmul.mubr.bf16.gmra.mxu0 %v278
    %v369 = vpop.f32.mrf.mxu0
    %v370 = vadd.f32 0.0, %v369
    %v371 = vpop.f32.mrf.mxu0
    %v372 = vpop.f32.mrf.mxu0
    %v373 = vadd.f32 0.0, %v372
    %v374 = vpop.f32.mrf.mxu0
    %375 = vmatprep.mubr.bf16.mxu0 0
    %376 = vmatmul.mubr.bf16.gmra.mxu0 %v281
    %v377 = vpop.f32.mrf.mxu0
    %v378 = vadd.f32 0.0, %v377
    %v379 = vpop.f32.mrf.mxu0
    %v380 = vpop.f32.mrf.mxu0
    %v381 = vadd.f32 0.0, %v380
    %v382 = vpop.f32.mrf.mxu0
    %383 = vdwg.mxu0
    %v385 = vsel %vm258, %v223, 0
    %v388 = vsel %vm258, %v224, 0
    %v391 = vsel %vm258, %v225, 0
    %v394 = vsel %vm258, %v226, 0
    %v397 = vsel %vm258, %v227, 0
    %v400 = vsel %vm258, %v228, 0
    %v403 = vsel %vm258, %v229, 0
    %v406 = vsel %vm258, %v230, 0
    %v409 = vsel %vm283, %v231, 0
    %411 = vmatprep.subr.bf16.mxu0 0
    %412 = vmatpush1.bf16.msra.mxu0 0
    %413 = vmatprep.subr.bf16.mxu0 0
    %414 = vmatpush1.bf16.msra.mxu0 0
    %415 = vmatprep.subr.bf16.mxu0 0
    %416 = vmatpush1.bf16.msra.mxu0 0
    %417 = vmatprep.subr.bf16.mxu0 0
    %418 = vmatpush1.bf16.msra.mxu0 0
    %419 = vmatprep.subr.bf16.mxu0 0
    %420 = vmatpush1.bf16.msra.mxu0 0
    %421 = vmatprep.subr.bf16.mxu0 0
    %422 = vmatpush1.bf16.msra.mxu0 0
    %423 = vmatprep.subr.bf16.mxu0 0
    %424 = vmatpush1.bf16.msra.mxu0 0
    %425 = vmatprep.subr.bf16.mxu0 0
    %426 = vmatpush1.bf16.msra.mxu0 %v409
    %427 = vmatprep.subr.bf16.mxu0 0
    %428 = vmatpush2.bf16.msra.mxu0 0
    %429 = vmatprep.subr.bf16.mxu0 0
    %430 = vmatpush2.bf16.msra.mxu0 0
    %431 = vmatprep.subr.bf16.mxu0 0
    %432 = vmatpush2.bf16.msra.mxu0 0
    %433 = vmatprep.subr.bf16.mxu0 0
    %434 = vmatpush2.bf16.msra.mxu0 0
    %435 = vmatprep.subr.bf16.mxu0 0
    %436 = vmatpush2.bf16.msra.mxu0 0
    %437 = vmatprep.subr.bf16.mxu0 0
    %438 = vmatpush2.bf16.msra.mxu0 0
    %439 = vmatprep.subr.bf16.mxu0 0
    %440 = vmatpush2.bf16.msra.mxu0 0
    %441 = vmatprep.subr.bf16.mxu0 0
    %442 = vmatpush2.bf16.msra.mxu0 0
    %443 = vmatprep.mubr.bf16.mxu0 0
    %444 = vmatmul.mubr.bf16.gmra.mxu0 %v385
    %v445 = vpop.f32.mrf.mxu0
    %v446 = vadd.f32 %v322, %v445
    %v447 = vpop.f32.mrf.mxu0
    %v448 = vpop.f32.mrf.mxu0
    %v449 = vadd.f32 %v325, %v448
    %v450 = vpop.f32.mrf.mxu0
    %451 = vmatprep.mubr.bf16.mxu0 0
    %452 = vmatmul.mubr.bf16.gmra.mxu0 %v388
    %v453 = vpop.f32.mrf.mxu0
    %v454 = vadd.f32 %v330, %v453
    %v455 = vpop.f32.mrf.mxu0
    %v456 = vpop.f32.mrf.mxu0
    %v457 = vadd.f32 %v333, %v456
    %v458 = vpop.f32.mrf.mxu0
    %459 = vmatprep.mubr.bf16.mxu0 0
    %460 = vmatmul.mubr.bf16.gmra.mxu0 %v391
    %v461 = vpop.f32.mrf.mxu0
    %v462 = vadd.f32 %v338, %v461
    %v463 = vpop.f32.mrf.mxu0
    %v464 = vpop.f32.mrf.mxu0
    %v465 = vadd.f32 %v341, %v464
    %v466 = vpop.f32.mrf.mxu0
    %467 = vmatprep.mubr.bf16.mxu0 0
    %468 = vmatmul.mubr.bf16.gmra.mxu0 %v394
    %v469 = vpop.f32.mrf.mxu0
    %v470 = vadd.f32 %v346, %v469
    %v471 = vpop.f32.mrf.mxu0
    %v472 = vpop.f32.mrf.mxu0
    %v473 = vadd.f32 %v349, %v472
    %v474 = vpop.f32.mrf.mxu0
    %475 = vmatprep.mubr.bf16.mxu0 0
    %476 = vmatmul.mubr.bf16.gmra.mxu0 %v397
    %v477 = vpop.f32.mrf.mxu0
    %v478 = vadd.f32 %v354, %v477
    %v479 = vpop.f32.mrf.mxu0
    %v480 = vpop.f32.mrf.mxu0
    %v481 = vadd.f32 %v357, %v480
    %v482 = vpop.f32.mrf.mxu0
    %483 = vmatprep.mubr.bf16.mxu0 0
    %484 = vmatmul.mubr.bf16.gmra.mxu0 %v400
    %v485 = vpop.f32.mrf.mxu0
    %v486 = vadd.f32 %v362, %v485
    %v487 = vpop.f32.mrf.mxu0
    %v488 = vpop.f32.mrf.mxu0
    %v489 = vadd.f32 %v365, %v488
    %v490 = vpop.f32.mrf.mxu0
    %491 = vmatprep.mubr.bf16.mxu0 0
    %492 = vmatmul.mubr.bf16.gmra.mxu0 %v403
    %v493 = vpop.f32.mrf.mxu0
    %v494 = vadd.f32 %v370, %v493
    %v495 = vpop.f32.mrf.mxu0
    %v496 = vpop.f32.mrf.mxu0
    %v497 = vadd.f32 %v373, %v496
    %v498 = vpop.f32.mrf.mxu0
    %499 = vmatprep.mubr.bf16.mxu0 0
    %500 = vmatmul.mubr.bf16.gmra.mxu0 %v406
    %v501 = vpop.f32.mrf.mxu0
    %v502 = vadd.f32 %v378, %v501
    %v503 = vpop.f32.mrf.mxu0
    %v504 = vpop.f32.mrf.mxu0
    %v505 = vadd.f32 %v381, %v504
    %v506 = vpop.f32.mrf.mxu0
    %507 = vdwg.mxu0
    %508 = vst [vmem:[#allocation4] sm:$0xff] %v446
    %509 = vst [vmem:[#allocation4 + $0x8] sm:$0xff] %v449
    %510 = vst [vmem:[#allocation4 + $0x10] sm:$0xff] %v454
    %511 = vst [vmem:[#allocation4 + $0x18] sm:$0xff] %v457
    %512 = vst [vmem:[#allocation4 + $0x20] sm:$0xff] %v462
    %513 = vst [vmem:[#allocation4 + $0x28] sm:$0xff] %v465
    %514 = vst [vmem:[#allocation4 + $0x30] sm:$0xff] %v470
    %515 = vst [vmem:[#allocation4 + $0x38] sm:$0xff] %v473
    %516 = vst [vmem:[#allocation4 + $0x40] sm:$0xff] %v478
    %517 = vst [vmem:[#allocation4 + $0x48] sm:$0xff] %v481
    %518 = vst [vmem:[#allocation4 + $0x50] sm:$0xff] %v486
    %519 = vst [vmem:[#allocation4 + $0x58] sm:$0xff] %v489
    %520 = vst [vmem:[#allocation4 + $0x60] sm:$0xff] %v494
    %521 = vst [vmem:[#allocation4 + $0x68] sm:$0xff] %v497
    %522 = vst [vmem:[#allocation4 + $0x70] sm:$0xff] %v502
    %523 = vst [vmem:[#allocation4 + $0x78] sm:$0xff] %v505
    // Predicated region
    $region90: #{token_merge.1} parent=1 // pred_check
      _
    $region91: #{token_merge.1} parent=1 // pred_check_branch
      %525 = sbr.rel (0) target = $region93
    $region92: #{token_merge.1} parent=1 // pred_region
      %s527 = ssub.s32 2048, 2048
      %528 = vsyncadd [#allocation5], %s527
      %s529 = sshll.u32 [#allocation4], 4
      %s530 = int_to_ptr.vmem [resolvable:$true] %s529
      %535 = dma.vmem_to_hbm [thread:$0]  %s530, 2048, %s3, [#allocation5], 128, 128, 8
    $region93: #{token_merge.1} parent=1 // pred_fallthru
      _
    // Predicated region
    $region94: #{token_merge.1} parent=1 // pred_check
      _
    $region95: #{token_merge.1} parent=1 // pred_check_branch
      %537 = sbr.rel (0) target = $region97
    $region96: #{token_merge.1} parent=1 // pred_region
      %538 = dma.done [#allocation5], 2048
    $region97: #{token_merge.1} parent=1 // pred_fallthru
      _
    %539 = vsyncpa [#allocation5], 1

</llo_original>
